<compile_context>
chip_gen: v5e
topology: v5e:2x2
jax: 0.10.0
libtpu: 0.0.40
codegen_flags: <defaults>
</compile_context>

<pallas_src>
import functools

import jax
import jax.numpy as jnp
from jax.experimental import pallas as pl
from jax.experimental.pallas import tpu as pltpu

EPS = 1e-5
LANE = 128

# Row layout of the packed (8,128) f32 vector slab.
_G1, _BE1, _G2, _BE2, _G3, _BE3, _B4 = range(7)


# --------------------------------------------------------------------------
# Kernel
# --------------------------------------------------------------------------
def mlp_kernel(x_ref, w_ref, v_ref, o_ref):
    """Fused 4-layer MLP with BatchNorm + ReLU, fully VMEM-resident.

    x_ref : (B, 128)       bf16  lane-padded input
    w_ref : (4, 128, 128)  bf16  stacked weights (w1 rows / w4 cols zero-padded)
    v_ref : (8, 128)       f32   packed [g1, be1, g2, be2, g3, be3, b4_pad, 0]
    o_ref : (B, 128)       f32   lane-padded output
    """
    bf = w_ref.dtype

    def mm(h, layer):
        # bf16 MXU operands, f32 accumulation.
        return jnp.dot(h, w_ref[layer], preferred_element_type=jnp.float32)

    def bn_relu(h, g_row, be_row):
        # Training-mode BatchNorm1d: biased batch statistics, f32 math
        # (keep element-wise math in f32: v5e VPU/EUP have no bf16 path).
        mean = jnp.mean(h, axis=0, keepdims=True)
        c = h - mean
        var = jnp.mean(c * c, axis=0, keepdims=True)
        # gamma folded into the rsqrt -> a (1,128) vector op, not a (B,128) mul
        scale = v_ref[g_row:g_row + 1, :] * jax.lax.rsqrt(var + EPS)
        return jnp.maximum(c * scale + v_ref[be_row:be_row + 1, :], 0.0)

    h = bn_relu(mm(x_ref[...], 0), _G1, _BE1)          # x already bf16
    h = bn_relu(mm(h.astype(bf), 1), _G2, _BE2)
    h = bn_relu(mm(h.astype(bf), 2), _G3, _BE3)
    o_ref[...] = (mm(h.astype(bf), 3)
                  + v_ref[_B4:_B4 + 1, :]).astype(o_ref.dtype)


# --------------------------------------------------------------------------
# One-time parameter preparation (runs once, outside the hot path)
# --------------------------------------------------------------------------
def _round_up(n, m):
    return (n + m - 1) // m * m


def _pad_axis(a, axis, target):
    pad = target - a.shape[axis]
    if pad == 0:
        return a
    widths = [(0, 0)] * a.ndim
    widths[axis] = (0, pad)
    return jnp.pad(a, widths)


def prepare_params(params, compute_dtype=jnp.bfloat16):
    """Pad, cast and stack the module parameters into kernel-ready form."""
    (w1, b1, g1, be1, w2, b2, g2, be2, w3, b3, g3, be3, w4, b4) = params
    del b1, b2, b3  # exactly canceled by training-mode BN batch-mean subtraction

    D_in, H = w1.shape
    H2, H3, D_out = w2.shape[1], w3.shape[1], w4.shape[1]
    assert H == H2 == H3 == LANE, "single-tile path assumes H = H2 = H3 = 128"
    assert D_in <= LANE and D_out <= LANE, "single-tile path assumes D_in, D_out <= 128"
    # TODO(synk): larger dims / batches need the tiled two-pass-BN pipeline.

    w1_p = _pad_axis(w1, 0, LANE)   # zero rows: exact (x zero-padded to match)
    w4_p = _pad_axis(w4, 1, LANE)   # zero cols: sliced off after the call
    w_stack = jnp.stack([w1_p, w2, w3, w4_p]).astype(compute_dtype)     # (4,128,128)

    vec_rows = [g1, be1, g2, be2, g3, be3, _pad_axis(b4, 1, LANE)]
    v_stack = jnp.concatenate(
        [v.reshape(1, LANE).astype(jnp.float32) for v in vec_rows]
        + [jnp.zeros((1, LANE), jnp.float32)], axis=0)                  # (8,128)

    return w_stack, v_stack, D_in, D_out


# --------------------------------------------------------------------------
# Jitted forward (pad/cast of x and output slice fuse with neighbors)
# --------------------------------------------------------------------------
@functools.partial(jax.jit, static_argnames=("d_out",))
def net_forward(x, w_stack, v_stack, d_out):
    B, D_in = x.shape
    x_p = jnp.pad(x, ((0, 0), (0, LANE - D_in))).astype(w_stack.dtype)

    flops = 2 * B * LANE * LANE * 4
    bytes_accessed = (x_p.size * x_p.dtype.itemsize
                      + w_stack.size * w_stack.dtype.itemsize
                      + v_stack.size * v_stack.dtype.itemsize
                      + B * LANE * 4)
    cost = pl.CostEstimate(flops=flops,
                           transcendentals=3 * LANE,      # one rsqrt per feature
                           bytes_accessed=bytes_accessed)

    vmem = pl.BlockSpec(memory_space=pltpu.MemorySpace.VMEM)
    out_padded = pl.pallas_call(
        mlp_kernel,
        out_shape=jax.ShapeDtypeStruct((B, LANE), jnp.float32),
        in_specs=[vmem, vmem, vmem],
        out_specs=vmem,
        cost_estimate=cost,
    )(x_p, w_stack, v_stack)
    return out_padded[:, :d_out]


# --------------------------------------------------------------------------
# Parameter init + pure-JAX references
# --------------------------------------------------------------------------
def init_params(key, D_in, D_out, H=128, H2=128, H3=128):
    ks = jax.random.split(key, 7)

    def lin(k, fan_in, fan_out):
        bound = 1.0 / jnp.sqrt(fan_in)
        kw, kb = jax.random.split(k)
        w = jax.random.uniform(kw, (fan_in, fan_out), jnp.float32, -bound, bound)
        b = jax.random.uniform(kb, (1, fan_out), jnp.float32, -bound, bound)
        return w, b

    def bn(k, f):
        kg, kb = jax.random.split(k)
        g = 1.0 + 0.1 * jax.random.normal(kg, (1, f), jnp.float32)
        be = 0.1 * jax.random.normal(kb, (1, f), jnp.float32)
        return g, be

    w1, b1 = lin(ks[0], D_in, H)
    g1, be1 = bn(ks[1], H)
    w2, b2 = lin(ks[2], H, H2)
    g2, be2 = bn(ks[3], H2)
    w3, b3 = lin(ks[4], H2, H3)
    g3, be3 = bn(ks[5], H3)
    w4, b4 = lin(ks[6], H3, D_out)
    return (w1, b1, g1, be1, w2, b2, g2, be2, w3, b3, g3, be3, w4, b4)


def net_forward_ref_f32(x, params):
    """Pure-f32 PyTorch-semantics reference (biases included)."""
    (w1, b1, g1, be1, w2, b2, g2, be2, w3, b3, g3, be3, w4, b4) = params

    def bn_relu(h, g, be):
        mean = jnp.mean(h, axis=0, keepdims=True)
        var = jnp.mean((h - mean) ** 2, axis=0, keepdims=True)
        return jnp.maximum((h - mean) * jax.lax.rsqrt(var + EPS) * g + be, 0.0)

    h = bn_relu(x @ w1 + b1, g1, be1)
    h = bn_relu(h @ w2 + b2, g2, be2)
    h = bn_relu(h @ w3 + b3, g3, be3)
    return h @ w4 + b4


def net_forward_ref_mixed(x, params):
    """Reference mirroring the kernel's dtype strategy (bf16 matmul operands,
    f32 accumulation / BN math, pre-BN biases dropped)."""
    (w1, _b1, g1, be1, w2, _b2, g2, be2, w3, _b3, g3, be3, w4, b4) = params
    bf = jnp.bfloat16

    def mm(h, w):
        return jnp.dot(h.astype(bf), w.astype(bf),
                       preferred_element_type=jnp.float32)

    def bn_relu(h, g, be):
        mean = jnp.mean(h, axis=0, keepdims=True)
        c = h - mean
        var = jnp.mean(c * c, axis=0, keepdims=True)
        return jnp.maximum(c * (g * jax.lax.rsqrt(var + EPS)) + be, 0.0)

    h = bn_relu(mm(x, w1), g1, be1)
    h = bn_relu(mm(h, w2), g2, be2)
    h = bn_relu(mm(h, w3), g3, be3)
    return mm(h, w4) + b4


# --------------------------------------------------------------------------
if __name__ == "__main__":
    B, D_in, D_out = 8, 32, 16
    key = jax.random.PRNGKey(0)
    kx, kp = jax.random.split(key)
    x = jax.random.normal(kx, (B, D_in), jnp.float32)
    params = init_params(kp, D_in, D_out)

    # One-time preprocessing (outside the hot path).
    w_stack, v_stack, d_in, d_out = prepare_params(params)

    out = net_forward(x, w_stack, v_stack, d_out=d_out)
    jax.block_until_ready(out)
    assert out.shape == (B, D_out)

    # Tight check vs a pure-JAX reference using the same bf16-matmul strategy.
    ref_mixed = net_forward_ref_mixed(x, params)
    assert jnp.allclose(out, ref_mixed, atol=1e-2, rtol=1e-2), \
        "mismatch vs bf16-matmul JAX reference"

    # Semantics check vs the full-f32 PyTorch-equivalent reference
    # (looser tolerance only because matmul operands are bf16).
    ref_f32 = net_forward_ref_f32(x, params)
    assert jnp.allclose(out, ref_f32, atol=5e-2, rtol=5e-2), \
        "mismatch vs f32 PyTorch-semantics reference"

    print("KERNEL_OK")
</pallas_src>

<mosaic_0001>
module attributes {stable_mosaic.version = 11 : i64} {
  func.func @mlp_kernel(%arg0: memref<8x128xbf16, #tpu.memory_space<vmem>>, %arg1: memref<4x128x128xbf16, #tpu.memory_space<vmem>>, %arg2: memref<8x128xf32, #tpu.memory_space<vmem>>, %arg3: memref<8x128xf32, #tpu.memory_space<vmem>>) attributes {dimension_semantics = [], scalar_prefetch = 0 : i64, scratch_operands = 0 : i64, tpu.core_type = #tpu.core_type<tc>} {
    %c0 = arith.constant 0 : index
    %c0_0 = arith.constant 0 : index
    %0 = vector.load %arg0[%c0, %c0_0] : memref<8x128xbf16, #tpu.memory_space<vmem>>, vector<8x128xbf16>
    %c0_1 = arith.constant 0 : index
    %c0_2 = arith.constant 0 : index
    %c0_3 = arith.constant 0 : index
    %1 = vector.load %arg1[%c0_1, %c0_2, %c0_3] : memref<4x128x128xbf16, #tpu.memory_space<vmem>>, vector<1x128x128xbf16>
    %2 = vector.shape_cast %1 : vector<1x128x128xbf16> to vector<128x128xbf16>
    %cst = arith.constant dense<0.000000e+00> : vector<8x128xf32>
    %3 = tpu.matmul %0, %2, %cst {dimension_numbers = #tpu.dot_dimension_numbers<[1], [0], [0], [1], [0, 0, 1, 1], [], []>} : vector<8x128xbf16>, vector<128x128xbf16>, vector<8x128xf32> -> vector<8x128xf32>
    %cst_4 = arith.constant dense<0.000000e+00> : vector<128xf32>
    %4 = vector.multi_reduction <add>, %3, %cst_4 [0] : vector<8x128xf32> to vector<128xf32>
    %5 = vector.shape_cast %4 : vector<128xf32> to vector<1x128xf32>
    %cst_5 = arith.constant 8.000000e+00 : f32
    %6 = vector.broadcast %cst_5 : f32 to vector<1x128xf32>
    %7 = arith.divf %5, %6 : vector<1x128xf32>
    %8 = vector.broadcast %7 : vector<1x128xf32> to vector<8x128xf32>
    %9 = arith.subf %3, %8 : vector<8x128xf32>
    %10 = arith.mulf %9, %9 : vector<8x128xf32>
    %cst_6 = arith.constant dense<0.000000e+00> : vector<128xf32>
    %11 = vector.multi_reduction <add>, %10, %cst_6 [0] : vector<8x128xf32> to vector<128xf32>
    %12 = vector.shape_cast %11 : vector<128xf32> to vector<1x128xf32>
    %cst_7 = arith.constant 8.000000e+00 : f32
    %13 = vector.broadcast %cst_7 : f32 to vector<1x128xf32>
    %14 = arith.divf %12, %13 : vector<1x128xf32>
    %c0_8 = arith.constant 0 : index
    %c0_9 = arith.constant 0 : index
    %15 = vector.load %arg2[%c0_8, %c0_9] : memref<8x128xf32, #tpu.memory_space<vmem>>, vector<1x128xf32>
    %cst_10 = arith.constant 9.99999974E-6 : f32
    %16 = vector.broadcast %cst_10 : f32 to vector<1x128xf32>
    %17 = arith.addf %14, %16 : vector<1x128xf32>
    %18 = math.rsqrt %17 : vector<1x128xf32>
    %19 = arith.mulf %15, %18 : vector<1x128xf32>
    %20 = vector.broadcast %19 : vector<1x128xf32> to vector<8x128xf32>
    %21 = arith.mulf %9, %20 : vector<8x128xf32>
    %c1 = arith.constant 1 : index
    %c0_11 = arith.constant 0 : index
    %22 = vector.load %arg2[%c1, %c0_11] : memref<8x128xf32, #tpu.memory_space<vmem>>, vector<1x128xf32>
    %23 = vector.broadcast %22 : vector<1x128xf32> to vector<8x128xf32>
    %24 = arith.addf %21, %23 : vector<8x128xf32>
    %cst_12 = arith.constant 0.000000e+00 : f32
    %25 = vector.broadcast %cst_12 : f32 to vector<8x128xf32>
    %26 = arith.maximumf %24, %25 : vector<8x128xf32>
    %27 = arith.truncf %26 : vector<8x128xf32> to vector<8x128xbf16>
    %c1_13 = arith.constant 1 : index
    %c0_14 = arith.constant 0 : index
    %c0_15 = arith.constant 0 : index
    %28 = vector.load %arg1[%c1_13, %c0_14, %c0_15] : memref<4x128x128xbf16, #tpu.memory_space<vmem>>, vector<1x128x128xbf16>
    %29 = vector.shape_cast %28 : vector<1x128x128xbf16> to vector<128x128xbf16>
    %cst_16 = arith.constant dense<0.000000e+00> : vector<8x128xf32>
    %30 = tpu.matmul %27, %29, %cst_16 {dimension_numbers = #tpu.dot_dimension_numbers<[1], [0], [0], [1], [0, 0, 1, 1], [], []>} : vector<8x128xbf16>, vector<128x128xbf16>, vector<8x128xf32> -> vector<8x128xf32>
    %cst_17 = arith.constant dense<0.000000e+00> : vector<128xf32>
    %31 = vector.multi_reduction <add>, %30, %cst_17 [0] : vector<8x128xf32> to vector<128xf32>
    %32 = vector.shape_cast %31 : vector<128xf32> to vector<1x128xf32>
    %cst_18 = arith.constant 8.000000e+00 : f32
    %33 = vector.broadcast %cst_18 : f32 to vector<1x128xf32>
    %34 = arith.divf %32, %33 : vector<1x128xf32>
    %35 = vector.broadcast %34 : vector<1x128xf32> to vector<8x128xf32>
    %36 = arith.subf %30, %35 : vector<8x128xf32>
    %37 = arith.mulf %36, %36 : vector<8x128xf32>
    %cst_19 = arith.constant dense<0.000000e+00> : vector<128xf32>
    %38 = vector.multi_reduction <add>, %37, %cst_19 [0] : vector<8x128xf32> to vector<128xf32>
    %39 = vector.shape_cast %38 : vector<128xf32> to vector<1x128xf32>
    %cst_20 = arith.constant 8.000000e+00 : f32
    %40 = vector.broadcast %cst_20 : f32 to vector<1x128xf32>
    %41 = arith.divf %39, %40 : vector<1x128xf32>
    %c2 = arith.constant 2 : index
    %c0_21 = arith.constant 0 : index
    %42 = vector.load %arg2[%c2, %c0_21] : memref<8x128xf32, #tpu.memory_space<vmem>>, vector<1x128xf32>
    %cst_22 = arith.constant 9.99999974E-6 : f32
    %43 = vector.broadcast %cst_22 : f32 to vector<1x128xf32>
    %44 = arith.addf %41, %43 : vector<1x128xf32>
    %45 = math.rsqrt %44 : vector<1x128xf32>
    %46 = arith.mulf %42, %45 : vector<1x128xf32>
    %47 = vector.broadcast %46 : vector<1x128xf32> to vector<8x128xf32>
    %48 = arith.mulf %36, %47 : vector<8x128xf32>
    %c3 = arith.constant 3 : index
    %c0_23 = arith.constant 0 : index
    %49 = vector.load %arg2[%c3, %c0_23] : memref<8x128xf32, #tpu.memory_space<vmem>>, vector<1x128xf32>
    %50 = vector.broadcast %49 : vector<1x128xf32> to vector<8x128xf32>
    %51 = arith.addf %48, %50 : vector<8x128xf32>
    %cst_24 = arith.constant 0.000000e+00 : f32
    %52 = vector.broadcast %cst_24 : f32 to vector<8x128xf32>
    %53 = arith.maximumf %51, %52 : vector<8x128xf32>
    %54 = arith.truncf %53 : vector<8x128xf32> to vector<8x128xbf16>
    %c2_25 = arith.constant 2 : index
    %c0_26 = arith.constant 0 : index
    %c0_27 = arith.constant 0 : index
    %55 = vector.load %arg1[%c2_25, %c0_26, %c0_27] : memref<4x128x128xbf16, #tpu.memory_space<vmem>>, vector<1x128x128xbf16>
    %56 = vector.shape_cast %55 : vector<1x128x128xbf16> to vector<128x128xbf16>
    %cst_28 = arith.constant dense<0.000000e+00> : vector<8x128xf32>
    %57 = tpu.matmul %54, %56, %cst_28 {dimension_numbers = #tpu.dot_dimension_numbers<[1], [0], [0], [1], [0, 0, 1, 1], [], []>} : vector<8x128xbf16>, vector<128x128xbf16>, vector<8x128xf32> -> vector<8x128xf32>
    %cst_29 = arith.constant dense<0.000000e+00> : vector<128xf32>
    %58 = vector.multi_reduction <add>, %57, %cst_29 [0] : vector<8x128xf32> to vector<128xf32>
    %59 = vector.shape_cast %58 : vector<128xf32> to vector<1x128xf32>
    %cst_30 = arith.constant 8.000000e+00 : f32
    %60 = vector.broadcast %cst_30 : f32 to vector<1x128xf32>
    %61 = arith.divf %59, %60 : vector<1x128xf32>
    %62 = vector.broadcast %61 : vector<1x128xf32> to vector<8x128xf32>
    %63 = arith.subf %57, %62 : vector<8x128xf32>
    %64 = arith.mulf %63, %63 : vector<8x128xf32>
    %cst_31 = arith.constant dense<0.000000e+00> : vector<128xf32>
    %65 = vector.multi_reduction <add>, %64, %cst_31 [0] : vector<8x128xf32> to vector<128xf32>
    %66 = vector.shape_cast %65 : vector<128xf32> to vector<1x128xf32>
    %cst_32 = arith.constant 8.000000e+00 : f32
    %67 = vector.broadcast %cst_32 : f32 to vector<1x128xf32>
    %68 = arith.divf %66, %67 : vector<1x128xf32>
    %c4 = arith.constant 4 : index
    %c0_33 = arith.constant 0 : index
    %69 = vector.load %arg2[%c4, %c0_33] : memref<8x128xf32, #tpu.memory_space<vmem>>, vector<1x128xf32>
    %cst_34 = arith.constant 9.99999974E-6 : f32
    %70 = vector.broadcast %cst_34 : f32 to vector<1x128xf32>
    %71 = arith.addf %68, %70 : vector<1x128xf32>
    %72 = math.rsqrt %71 : vector<1x128xf32>
    %73 = arith.mulf %69, %72 : vector<1x128xf32>
    %74 = vector.broadcast %73 : vector<1x128xf32> to vector<8x128xf32>
    %75 = arith.mulf %63, %74 : vector<8x128xf32>
    %c5 = arith.constant 5 : index
    %c0_35 = arith.constant 0 : index
    %76 = vector.load %arg2[%c5, %c0_35] : memref<8x128xf32, #tpu.memory_space<vmem>>, vector<1x128xf32>
    %77 = vector.broadcast %76 : vector<1x128xf32> to vector<8x128xf32>
    %78 = arith.addf %75, %77 : vector<8x128xf32>
    %cst_36 = arith.constant 0.000000e+00 : f32
    %79 = vector.broadcast %cst_36 : f32 to vector<8x128xf32>
    %80 = arith.maximumf %78, %79 : vector<8x128xf32>
    %81 = arith.truncf %80 : vector<8x128xf32> to vector<8x128xbf16>
    %c3_37 = arith.constant 3 : index
    %c0_38 = arith.constant 0 : index
    %c0_39 = arith.constant 0 : index
    %82 = vector.load %arg1[%c3_37, %c0_38, %c0_39] : memref<4x128x128xbf16, #tpu.memory_space<vmem>>, vector<1x128x128xbf16>
    %83 = vector.shape_cast %82 : vector<1x128x128xbf16> to vector<128x128xbf16>
    %cst_40 = arith.constant dense<0.000000e+00> : vector<8x128xf32>
    %84 = tpu.matmul %81, %83, %cst_40 {dimension_numbers = #tpu.dot_dimension_numbers<[1], [0], [0], [1], [0, 0, 1, 1], [], []>} : vector<8x128xbf16>, vector<128x128xbf16>, vector<8x128xf32> -> vector<8x128xf32>
    %c6 = arith.constant 6 : index
    %c0_41 = arith.constant 0 : index
    %85 = vector.load %arg2[%c6, %c0_41] : memref<8x128xf32, #tpu.memory_space<vmem>>, vector<1x128xf32>
    %86 = vector.broadcast %85 : vector<1x128xf32> to vector<8x128xf32>
    %87 = arith.addf %84, %86 : vector<8x128xf32>
    %c0_42 = arith.constant 0 : index
    %c0_43 = arith.constant 0 : index
    %88 = vector.load %arg3[%c0_42, %c0_43] : memref<8x128xf32, #tpu.memory_space<vmem>>, vector<8x128xf32>
    tpu.vector_store %arg3[%c0_42, %c0_43], %87 {strides = array<i32>} : memref<8x128xf32, #tpu.memory_space<vmem>>, vector<8x128xf32>,
    return
  }
}

</mosaic_0001>

<llo_original>
// kernel: net_forward.1
$region0: #{net_forward.1}
  #allocation0 [shape = 'u32[]', space=smem, size = 0x4, offset = 0x4, fixed_abs, tag = 'smem constant byte address 0x4 - core index']
  #allocation1 [shape = 'u32[72,128]{1,0:T(1,128)}', space=vmem, size = 0x9000, scoped, tag = 'internal scratch']
  %s0 = inlined_call_operand.vmem [shape: bf16[8,128], index: 0, kind: input, shape index: {}]
  %s1 = inlined_call_operand.hbm [shape: bf16[4,128,128], index: 1, kind: input, shape index: {}]
  %s2 = inlined_call_operand.vmem [shape: f32[8,128], index: 2, kind: input, shape index: {}]
  %s3 = inlined_call_operand.hbm [shape: f32[8,128], index: 3, kind: output, shape index: {}]
  %s4 = sld [smem:[#allocation0]]
  $region26: #{net_forward.1} parent=0
    _
  %s6 = ssub.s32 1, %s4
  %s7 = scalar_select 0, %s6, %s4
  $region1: #{net_forward.1} parent=0
    #allocation2 [shape = 'u8[131072]{0}', space=vmem, size = 0x20000, scoped, tag = 'input window, operand 1, single buffered']
    #allocation3 [shape = 's32[1]{0}', space=sflag, size = 0x4, scoped, tag = 'scoped memory for net_forward.1']
    #allocation4 [shape = 's32[1]{0}', space=sflag, size = 0x4, scoped, tag = 'scoped memory for net_forward.1']
    #allocation5 [shape = 'u8[4096]{0}', space=vmem, size = 0x1000, scoped, tag = 'output window, operand 0, single buffered']
    %8 = vsyncpa [#allocation3], 0
    %9 = vsyncpa [#allocation4], 0
    // Predicated region
    $region2: #{net_forward.1} parent=1 // pred_check
      _
    $region3: #{net_forward.1} parent=1 // pred_check_branch
      %11 = sbr.rel (0) target = $region5
    $region4: #{net_forward.1} parent=1 // pred_region
      _
    $region5: #{net_forward.1} parent=1 // pred_fallthru
      _
    // Predicated region
    $region6: #{net_forward.1} parent=1 // pred_check
      _
    $region7: #{net_forward.1} parent=1 // pred_check_branch
      %13 = sbr.rel (0) target = $region9
    $region8: #{net_forward.1} parent=1 // pred_region
      %15 = vsyncadd [#allocation3], 0
      %s16 = sshll.u32 %s1, 4
      %s17 = int_to_ptr.hbm [resolvable:$true] %s16
      %s18 = sshll.u32 [#allocation2], 4
      %s19 = int_to_ptr.vmem [resolvable:$true] %s18
      %24 = dma.hbm_to_vmem [thread:$0]  %s17, 4096, %s19, [#allocation3], 64, 64, 4
    $region9: #{net_forward.1} parent=1 // pred_fallthru
      _
    // Predicated region
    $region10: #{net_forward.1} parent=1 // pred_check
      _
    $region11: #{net_forward.1} parent=1 // pred_check_branch
      %26 = sbr.rel (0) target = $region13
    $region12: #{net_forward.1} parent=1 // pred_region
      _
    $region13: #{net_forward.1} parent=1 // pred_fallthru
      _
    // Predicated region
    $region14: #{net_forward.1} parent=1 // pred_check
      _
    $region15: #{net_forward.1} parent=1 // pred_check_branch
      %28 = sbr.rel (0) target = $region17
    $region16: #{net_forward.1} parent=1 // pred_region
      %30 = dma.done [#allocation3], 4096
    $region17: #{net_forward.1} parent=1 // pred_fallthru
      _
    %v31 = vld [vmem:[%s0] sm:$0xf]
    %v32 = vld [vmem:[#allocation2] sm:$0xf]
    %v33 = vld [vmem:[#allocation2 + $0x4] sm:$0xf]
    %v34 = vld [vmem:[#allocation2 + $0x8] sm:$0xf]
    %v35 = vld [vmem:[#allocation2 + $0xc] sm:$0xf]
    %v36 = vld [vmem:[#allocation2 + $0x10] sm:$0xf]
    %v37 = vld [vmem:[#allocation2 + $0x14] sm:$0xf]
    %v38 = vld [vmem:[#allocation2 + $0x18] sm:$0xf]
    %v39 = vld [vmem:[#allocation2 + $0x1c] sm:$0xf]
    %v40 = vld [vmem:[#allocation2 + $0x20] sm:$0xf]
    %v41 = vld [vmem:[#allocation2 + $0x24] sm:$0xf]
    %v42 = vld [vmem:[#allocation2 + $0x28] sm:$0xf]
    %v43 = vld [vmem:[#allocation2 + $0x2c] sm:$0xf]
    %v44 = vld [vmem:[#allocation2 + $0x30] sm:$0xf]
    %v45 = vld [vmem:[#allocation2 + $0x34] sm:$0xf]
    %v46 = vld [vmem:[#allocation2 + $0x38] sm:$0xf]
    %v47 = vld [vmem:[#allocation2 + $0x3c] sm:$0xf]
    %v64 = vunpack.c.l.b16 %v32
    %v65 = vunpack.c.l.b16 %v33
    %v66 = vunpack.c.l.b16 %v34
    %v67 = vunpack.c.l.b16 %v35
    %v68 = vunpack.c.l.b16 %v36
    %v69 = vunpack.c.l.b16 %v37
    %v70 = vunpack.c.l.b16 %v38
    %v71 = vunpack.c.l.b16 %v39
    %v72 = vunpack.c.l.b16 %v40
    %v73 = vunpack.c.l.b16 %v41
    %v74 = vunpack.c.l.b16 %v42
    %v75 = vunpack.c.l.b16 %v43
    %v76 = vunpack.c.l.b16 %v44
    %v77 = vunpack.c.l.b16 %v45
    %v78 = vunpack.c.l.b16 %v46
    %v79 = vunpack.c.l.b16 %v47
    %v80 = vpack.c.b16 %v65, %v64
    %v81 = vpack.c.b16 %v67, %v66
    %v82 = vpack.c.b16 %v69, %v68
    %v83 = vpack.c.b16 %v71, %v70
    %v84 = vpack.c.b16 %v73, %v72
    %v85 = vpack.c.b16 %v75, %v74
    %v86 = vpack.c.b16 %v77, %v76
    %v87 = vpack.c.b16 %v79, %v78
    %96 = vmatpush.bf16.msra.mxu0 %v87
    %97 = vmatpush.bf16.msra.mxu0 %v86
    %98 = vmatpush.bf16.msra.mxu0 %v85
    %99 = vmatpush.bf16.msra.mxu0 %v84
    %100 = vmatpush.bf16.msra.mxu0 %v83
    %101 = vmatpush.bf16.msra.mxu0 %v82
    %102 = vmatpush.bf16.msra.mxu0 %v81
    %103 = vmatpush.bf16.msra.mxu0 %v80
    %104 = vmatmul.bf16.gmra.mxu0 %v31
    %v105 = vpop.f32.mrf.mxu0
    %v106 = vadd.f32 0.0, %v105
    %v107 = vpop.f32.mrf.mxu0
    %108 = vdwg.mxu0
    %v109 = vrot.slane %v106, 4
    %v110 = vadd.f32 %v106, %v109
    %v111 = vrot.slane %v110, 2
    %v112 = vadd.f32 %v110, %v111
    %v113 = vrot.slane %v112, 1
    %v114 = vadd.f32 %v112, %v113
    %v115 = vrcp.pop 8.0
    %v116 = vmul.f32 8.0, %v115
    %v117 = vsub.f32 1.0, %v116
    %v118 = vmul.f32 %v115, %v117
    %v119 = vadd.f32 %v115, %v118
    %vm120 = vweird.f32 %v115
    %v121 = vsel %vm120, %v115, %v119
    %v122 = vmul.f32 %v114, %v121
    %v123 = vsub.f32 %v106, %v122
    %v124 = vmul.f32 %v123, %v123
    %v125 = vrot.slane %v124, 4
    %v126 = vadd.f32 %v124, %v125
    %v127 = vrot.slane %v126, 2
    %v128 = vadd.f32 %v126, %v127
    %v129 = vrot.slane %v128, 1
    %v130 = vadd.f32 %v128, %v129
    %v131 = vmul.f32 %v130, %v121
    %v132 = vld [vmem:[%s2] sm:$0x1]
    %v133 = vadd.f32 %v131, 1e-05
    %v134 = vrsqrt.pop %v133
    %v135 = vmul.f32 %v134, %v133
    %v136 = vmul.f32 %v135, %v134
    %v137 = vmul.f32 0.5, %v136
    %v138 = vsub.f32 1.5, %v137
    %v139 = vmul.f32 %v134, %v138
    %vm140 = vweird.f32 %v133
    %vm141 = vweird.f32 %v134
    %vm142 = vmor %vm140, %vm141
    %v143 = vsel %vm142, %v134, %v139
    %v144 = vmul.f32 %v132, %v143
    %v145 = vperm.slane %v144, 0
    %v146 = vmul.f32 %v123, %v145
    %v147 = vld [vmem:[%s2 + $0x1] sm:$0x1]
    %v148 = vperm.slane %v147, 0
    %v149 = vadd.f32 %v146, %v148
    %v150 = vmax.f32 %v149, 0.0
    %v151 = vpack.c.bf16 %v150, %v150
    %s152 = scalar_lea.vmem [#allocation2], 64
    %v153 = vld [vmem:[%s152] sm:$0xf]
    %v154 = vld [vmem:[%s152 + $0x4] sm:$0xf]
    %v155 = vld [vmem:[%s152 + $0x8] sm:$0xf]
    %v156 = vld [vmem:[%s152 + $0xc] sm:$0xf]
    %v157 = vld [vmem:[%s152 + $0x10] sm:$0xf]
    %v158 = vld [vmem:[%s152 + $0x14] sm:$0xf]
    %v159 = vld [vmem:[%s152 + $0x18] sm:$0xf]
    %v160 = vld [vmem:[%s152 + $0x1c] sm:$0xf]
    %v161 = vld [vmem:[%s152 + $0x20] sm:$0xf]
    %v162 = vld [vmem:[%s152 + $0x24] sm:$0xf]
    %v163 = vld [vmem:[%s152 + $0x28] sm:$0xf]
    %v164 = vld [vmem:[%s152 + $0x2c] sm:$0xf]
    %v165 = vld [vmem:[%s152 + $0x30] sm:$0xf]
    %v166 = vld [vmem:[%s152 + $0x34] sm:$0xf]
    %v167 = vld [vmem:[%s152 + $0x38] sm:$0xf]
    %v168 = vld [vmem:[%s152 + $0x3c] sm:$0xf]
    %v185 = vunpack.c.l.b16 %v153
    %v186 = vunpack.c.l.b16 %v154
    %v187 = vunpack.c.l.b16 %v155
    %v188 = vunpack.c.l.b16 %v156
    %v189 = vunpack.c.l.b16 %v157
    %v190 = vunpack.c.l.b16 %v158
    %v191 = vunpack.c.l.b16 %v159
    %v192 = vunpack.c.l.b16 %v160
    %v193 = vunpack.c.l.b16 %v161
    %v194 = vunpack.c.l.b16 %v162
    %v195 = vunpack.c.l.b16 %v163
    %v196 = vunpack.c.l.b16 %v164
    %v197 = vunpack.c.l.b16 %v165
    %v198 = vunpack.c.l.b16 %v166
    %v199 = vunpack.c.l.b16 %v167
    %v200 = vunpack.c.l.b16 %v168
    %v201 = vpack.c.b16 %v186, %v185
    %v202 = vpack.c.b16 %v188, %v187
    %v203 = vpack.c.b16 %v190, %v189
    %v204 = vpack.c.b16 %v192, %v191
    %v205 = vpack.c.b16 %v194, %v193
    %v206 = vpack.c.b16 %v196, %v195
    %v207 = vpack.c.b16 %v198, %v197
    %v208 = vpack.c.b16 %v200, %v199
    %217 = vmatpush.bf16.msra.mxu0 %v208
    %218 = vmatpush.bf16.msra.mxu0 %v207
    %219 = vmatpush.bf16.msra.mxu0 %v206
    %220 = vmatpush.bf16.msra.mxu0 %v205
    %221 = vmatpush.bf16.msra.mxu0 %v204
    %222 = vmatpush.bf16.msra.mxu0 %v203
    %223 = vmatpush.bf16.msra.mxu0 %v202
    %224 = vmatpush.bf16.msra.mxu0 %v201
    %225 = vmatmul.bf16.gmra.mxu0 %v151
    %v226 = vpop.f32.mrf.mxu0
    %v227 = vadd.f32 0.0, %v226
    %v228 = vpop.f32.mrf.mxu0
    %229 = vdwg.mxu0
    %v230 = vrot.slane %v227, 4
    %v231 = vadd.f32 %v227, %v230
    %v232 = vrot.slane %v231, 2
    %v233 = vadd.f32 %v231, %v232
    %v234 = vrot.slane %v233, 1
    %v235 = vadd.f32 %v233, %v234
    %v236 = vmul.f32 %v235, %v121
    %v237 = vsub.f32 %v227, %v236
    %v238 = vmul.f32 %v237, %v237
    %v239 = vrot.slane %v238, 4
    %v240 = vadd.f32 %v238, %v239
    %v241 = vrot.slane %v240, 2
    %v242 = vadd.f32 %v240, %v241
    %v243 = vrot.slane %v242, 1
    %v244 = vadd.f32 %v242, %v243
    %v245 = vmul.f32 %v244, %v121
    %v246 = vld [vmem:[%s2 + $0x2] sm:$0x1]
    %v247 = vadd.f32 %v245, 1e-05
    %v248 = vrsqrt.pop %v247
    %v249 = vmul.f32 %v248, %v247
    %v250 = vmul.f32 %v249, %v248
    %v251 = vmul.f32 0.5, %v250
    %v252 = vsub.f32 1.5, %v251
    %v253 = vmul.f32 %v248, %v252
    %vm254 = vweird.f32 %v247
    %vm255 = vweird.f32 %v248
    %vm256 = vmor %vm254, %vm255
    %v257 = vsel %vm256, %v248, %v253
    %v258 = vmul.f32 %v246, %v257
    %v259 = vperm.slane %v258, 0
    %v260 = vmul.f32 %v237, %v259
    %v261 = vld [vmem:[%s2 + $0x3] sm:$0x1]
    %v262 = vperm.slane %v261, 0
    %v263 = vadd.f32 %v260, %v262
    %v264 = vmax.f32 %v263, 0.0
    %v265 = vpack.c.bf16 %v264, %v264
    %s266 = scalar_lea.vmem [#allocation2], 128
    %v267 = vld [vmem:[%s266] sm:$0xf]
    %v268 = vld [vmem:[%s266 + $0x4] sm:$0xf]
    %v269 = vld [vmem:[%s266 + $0x8] sm:$0xf]
    %v270 = vld [vmem:[%s266 + $0xc] sm:$0xf]
    %v271 = vld [vmem:[%s266 + $0x10] sm:$0xf]
    %v272 = vld [vmem:[%s266 + $0x14] sm:$0xf]
    %v273 = vld [vmem:[%s266 + $0x18] sm:$0xf]
    %v274 = vld [vmem:[%s266 + $0x1c] sm:$0xf]
    %v275 = vld [vmem:[%s266 + $0x20] sm:$0xf]
    %v276 = vld [vmem:[%s266 + $0x24] sm:$0xf]
    %v277 = vld [vmem:[%s266 + $0x28] sm:$0xf]
    %v278 = vld [vmem:[%s266 + $0x2c] sm:$0xf]
    %v279 = vld [vmem:[%s266 + $0x30] sm:$0xf]
    %v280 = vld [vmem:[%s266 + $0x34] sm:$0xf]
    %v281 = vld [vmem:[%s266 + $0x38] sm:$0xf]
    %v282 = vld [vmem:[%s266 + $0x3c] sm:$0xf]
    %v299 = vunpack.c.l.b16 %v267
    %v300 = vunpack.c.l.b16 %v268
    %v301 = vunpack.c.l.b16 %v269
    %v302 = vunpack.c.l.b16 %v270
    %v303 = vunpack.c.l.b16 %v271
    %v304 = vunpack.c.l.b16 %v272
    %v305 = vunpack.c.l.b16 %v273
    %v306 = vunpack.c.l.b16 %v274
    %v307 = vunpack.c.l.b16 %v275
    %v308 = vunpack.c.l.b16 %v276
    %v309 = vunpack.c.l.b16 %v277
    %v310 = vunpack.c.l.b16 %v278
    %v311 = vunpack.c.l.b16 %v279
    %v312 = vunpack.c.l.b16 %v280
    %v313 = vunpack.c.l.b16 %v281
    %v314 = vunpack.c.l.b16 %v282
    %v315 = vpack.c.b16 %v300, %v299
    %v316 = vpack.c.b16 %v302, %v301
    %v317 = vpack.c.b16 %v304, %v303
    %v318 = vpack.c.b16 %v306, %v305
    %v319 = vpack.c.b16 %v308, %v307
    %v320 = vpack.c.b16 %v310, %v309
    %v321 = vpack.c.b16 %v312, %v311
    %v322 = vpack.c.b16 %v314, %v313
    %331 = vmatpush.bf16.msra.mxu0 %v322
    %332 = vmatpush.bf16.msra.mxu0 %v321
    %333 = vmatpush.bf16.msra.mxu0 %v320
    %334 = vmatpush.bf16.msra.mxu0 %v319
    %335 = vmatpush.bf16.msra.mxu0 %v318
    %336 = vmatpush.bf16.msra.mxu0 %v317
    %337 = vmatpush.bf16.msra.mxu0 %v316
    %338 = vmatpush.bf16.msra.mxu0 %v315
    %339 = vmatmul.bf16.gmra.mxu0 %v265
    %v340 = vpop.f32.mrf.mxu0
    %v341 = vadd.f32 0.0, %v340
    %v342 = vpop.f32.mrf.mxu0
    %343 = vdwg.mxu0
    %v344 = vrot.slane %v341, 4
    %v345 = vadd.f32 %v341, %v344
    %v346 = vrot.slane %v345, 2
    %v347 = vadd.f32 %v345, %v346
    %v348 = vrot.slane %v347, 1
    %v349 = vadd.f32 %v347, %v348
    %v350 = vmul.f32 %v349, %v121
    %v351 = vsub.f32 %v341, %v350
    %v352 = vmul.f32 %v351, %v351
    %v353 = vrot.slane %v352, 4
    %v354 = vadd.f32 %v352, %v353
    %v355 = vrot.slane %v354, 2
    %v356 = vadd.f32 %v354, %v355
    %v357 = vrot.slane %v356, 1
    %v358 = vadd.f32 %v356, %v357
    %v359 = vmul.f32 %v358, %v121
    %v360 = vld [vmem:[%s2 + $0x4] sm:$0x1]
    %v361 = vadd.f32 %v359, 1e-05
    %v362 = vrsqrt.pop %v361
    %v363 = vmul.f32 %v362, %v361
    %v364 = vmul.f32 %v363, %v362
    %v365 = vmul.f32 0.5, %v364
    %v366 = vsub.f32 1.5, %v365
    %v367 = vmul.f32 %v362, %v366
    %vm368 = vweird.f32 %v361
    %vm369 = vweird.f32 %v362
    %vm370 = vmor %vm368, %vm369
    %v371 = vsel %vm370, %v362, %v367
    %v372 = vmul.f32 %v360, %v371
    %v373 = vperm.slane %v372, 0
    %v374 = vmul.f32 %v351, %v373
    %v375 = vld [vmem:[%s2 + $0x5] sm:$0x1]
    %v376 = vperm.slane %v375, 0
    %v377 = vadd.f32 %v374, %v376
    %v378 = vmax.f32 %v377, 0.0
    %v379 = vpack.c.bf16 %v378, %v378
    %s380 = scalar_lea.vmem [#allocation2], 192
    %v381 = vld [vmem:[%s380] sm:$0xf]
    %v382 = vld [vmem:[%s380 + $0x4] sm:$0xf]
    %v383 = vld [vmem:[%s380 + $0x8] sm:$0xf]
    %v384 = vld [vmem:[%s380 + $0xc] sm:$0xf]
    %v385 = vld [vmem:[%s380 + $0x10] sm:$0xf]
    %v386 = vld [vmem:[%s380 + $0x14] sm:$0xf]
    %v387 = vld [vmem:[%s380 + $0x18] sm:$0xf]
    %v388 = vld [vmem:[%s380 + $0x1c] sm:$0xf]
    %v389 = vld [vmem:[%s380 + $0x20] sm:$0xf]
    %v390 = vld [vmem:[%s380 + $0x24] sm:$0xf]
    %v391 = vld [vmem:[%s380 + $0x28] sm:$0xf]
    %v392 = vld [vmem:[%s380 + $0x2c] sm:$0xf]
    %v393 = vld [vmem:[%s380 + $0x30] sm:$0xf]
    %v394 = vld [vmem:[%s380 + $0x34] sm:$0xf]
    %v395 = vld [vmem:[%s380 + $0x38] sm:$0xf]
    %v396 = vld [vmem:[%s380 + $0x3c] sm:$0xf]
    %v397 = vld [vmem:[%s2 + $0x6] sm:$0x1]
    %v398 = vperm.slane %v397, 0
    %v415 = vunpack.c.l.b16 %v381
    %v416 = vunpack.c.l.b16 %v382
    %v417 = vunpack.c.l.b16 %v383
    %v418 = vunpack.c.l.b16 %v384
    %v419 = vunpack.c.l.b16 %v385
    %v420 = vunpack.c.l.b16 %v386
    %v421 = vunpack.c.l.b16 %v387
    %v422 = vunpack.c.l.b16 %v388
    %v423 = vunpack.c.l.b16 %v389
    %v424 = vunpack.c.l.b16 %v390
    %v425 = vunpack.c.l.b16 %v391
    %v426 = vunpack.c.l.b16 %v392
    %v427 = vunpack.c.l.b16 %v393
    %v428 = vunpack.c.l.b16 %v394
    %v429 = vunpack.c.l.b16 %v395
    %v430 = vunpack.c.l.b16 %v396
    %v431 = vpack.c.b16 %v416, %v415
    %v432 = vpack.c.b16 %v418, %v417
    %v433 = vpack.c.b16 %v420, %v419
    %v434 = vpack.c.b16 %v422, %v421
    %v435 = vpack.c.b16 %v424, %v423
    %v436 = vpack.c.b16 %v426, %v425
    %v437 = vpack.c.b16 %v428, %v427
    %v438 = vpack.c.b16 %v430, %v429
    %447 = vmatpush.bf16.msra.mxu0 %v438
    %448 = vmatpush.bf16.msra.mxu0 %v437
    %449 = vmatpush.bf16.msra.mxu0 %v436
    %450 = vmatpush.bf16.msra.mxu0 %v435
    %451 = vmatpush.bf16.msra.mxu0 %v434
    %452 = vmatpush.bf16.msra.mxu0 %v433
    %453 = vmatpush.bf16.msra.mxu0 %v432
    %454 = vmatpush.bf16.msra.mxu0 %v431
    %455 = vmatmul.bf16.gmra.mxu0 %v379
    %v456 = vpop.f32.mrf.mxu0
    %v457 = vadd.f32 %v398, %v456
    %v458 = vpop.f32.mrf.mxu0
    %459 = vdwg.mxu0
    %460 = vst [vmem:[#allocation5] sm:$0xff] %v457
    // Predicated region
    $region18: #{net_forward.1} parent=1 // pred_check
      _
    $region19: #{net_forward.1} parent=1 // pred_check_branch
      %462 = sbr.rel (0) target = $region21
    $region20: #{net_forward.1} parent=1 // pred_region
      %464 = vsyncadd [#allocation4], 0
      %s466 = sshll.u32 [#allocation5], 4
      %s467 = int_to_ptr.vmem [resolvable:$true] %s466
      %s468 = sshll.u32 %s3, 4
      %s469 = int_to_ptr.hbm [resolvable:$true] %s468
      %471 = dma.vmem_to_hbm [thread:$0]  %s467, 128, %s469, [#allocation4]
    $region21: #{net_forward.1} parent=1 // pred_fallthru
      _
    // Predicated region
    $region22: #{net_forward.1} parent=1 // pred_check
      _
    $region23: #{net_forward.1} parent=1 // pred_check_branch
      %473 = sbr.rel (0) target = $region25
    $region24: #{net_forward.1} parent=1 // pred_region
      %475 = dma.done [#allocation4], 128
    $region25: #{net_forward.1} parent=1 // pred_fallthru
      _
    %476 = vsyncpa [#allocation3], 1
    %477 = vsyncpa [#allocation4], 1

</llo_original>
